<compile_context>
chip_gen: v6e
topology: v6e:2x2x1
jax: 0.10.0
libtpu: 0.0.40
codegen_flags: <defaults>
</compile_context>

<pallas_src>
import math

import jax
import jax.numpy as jnp
from jax.experimental import pallas as pl
from jax.experimental.pallas import tpu as pltpu

OBS_DIM = 22
ACT_DIM = 4
IN_DIM = OBS_DIM + ACT_DIM        # 26
IN_DIM_PAD = 32                   # lane-friendly input slab (zero-padded)
HIDDEN = 256
OUT_DIM = OBS_DIM                 # 22

MAX_TILE_B = 4096                 # keeps working set well inside v7x VMEM
VMEM_LIMIT_BYTES = 32 << 20


def _round_up(n, m):
    return ((n + m - 1) // m) * m


def _choose_tile_b(batch, tile_b):
    """Pick a batch tile: multiple of 16 (bf16 packing), capped for VMEM,
    and split into >=2 grid steps for big batches (v7x dual-TC)."""
    tile_b = _round_up(max(16, min(int(tile_b), MAX_TILE_B)), 16)
    padded = _round_up(batch, 16)
    if padded <= tile_b:
        if padded >= 512:
            # Aim for (at least) 2 parallel grid steps so both TensorCores
            # on v7x get work; round the half-tile to 256 rows.
            return min(_round_up(pl.cdiv(padded, 2), 256), padded)
        return padded
    return tile_b


def _mlp_kernel(x_ref, w1_ref, b1_ref, w2_ref, b2_ref, w3_ref, b3_ref, o_ref):
    # One batch tile per grid step. Matmul inputs are bf16 (native MXU path),
    # accumulation / bias / ReLU in f32 (v5e has no bf16 VPU).
    x = x_ref[...]                                                   # bf16 tile

    h1 = jnp.dot(x, w1_ref[...], preferred_element_type=jnp.float32) + b1_ref[...]
    h1 = jnp.maximum(h1, 0.0)

    h2 = jnp.dot(h1.astype(w2_ref.dtype), w2_ref[...],
                 preferred_element_type=jnp.float32) + b2_ref[...]
    h2 = jnp.maximum(h2, 0.0)

    out = jnp.dot(h2.astype(w3_ref.dtype), w3_ref[...],
                  preferred_element_type=jnp.float32) + b3_ref[...]
    o_ref[...] = out.astype(o_ref.dtype)


def state_nn_forward(x, params, tile_b=2048):
    """x: (batch, 26). Returns (batch, 22) bfloat16."""
    w1, b1, w2, b2, w3, b3 = params
    batch = x.shape[0]

    tile_b = _choose_tile_b(batch, tile_b)
    padded = _round_up(_round_up(batch, 16), tile_b)

    # Cast to bf16 and zero-pad: batch -> padded rows, features 26 -> 32 lanes
    # (single fused pad; padded lanes hit zero rows of w1 so results match).
    x = jnp.pad(x.astype(w1.dtype),
                ((0, padded - batch), (0, IN_DIM_PAD - IN_DIM)))
    w1p = jnp.pad(w1, ((0, IN_DIM_PAD - IN_DIM), (0, 0)))

    grid = (padded // tile_b,)

    def batch_spec(nfeat):
        return pl.BlockSpec((tile_b, nfeat), lambda i: (i, 0))

    def const_spec(shape):
        # Same block every grid step -> stays VMEM-resident; single-buffered
        # (no point double-buffering data that never changes).
        return pl.BlockSpec(shape, lambda i: (0, 0),
                            pipeline_mode=pl.Buffered(1))

    flops = 2 * padded * (IN_DIM_PAD * HIDDEN + HIDDEN * HIDDEN + HIDDEN * OUT_DIM)
    weight_bytes = (int(w1p.size) * w1p.dtype.itemsize
                    + sum(int(p.size) * p.dtype.itemsize
                          for p in (b1, w2, b2, w3, b3)))
    bytes_accessed = (
        padded * IN_DIM_PAD * x.dtype.itemsize        # x read (bf16)
        + padded * OUT_DIM * 2                        # bf16 output write
        + weight_bytes
    )

    out = pl.pallas_call(
        _mlp_kernel,
        out_shape=jax.ShapeDtypeStruct((padded, OUT_DIM), jnp.bfloat16),
        grid=grid,
        in_specs=[
            batch_spec(IN_DIM_PAD),
            const_spec(w1p.shape), const_spec(b1.shape),
            const_spec(w2.shape), const_spec(b2.shape),
            const_spec(w3.shape), const_spec(b3.shape),
        ],
        out_specs=batch_spec(OUT_DIM),
        compiler_params=pltpu.CompilerParams(
            dimension_semantics=("parallel",),
            vmem_limit_bytes=VMEM_LIMIT_BYTES,
        ),
        cost_estimate=pl.CostEstimate(
            flops=flops, transcendentals=0, bytes_accessed=bytes_accessed),
    )(x, w1p, b1, w2, b2, w3, b3)

    return out[:batch]


def xavier_uniform(key, fan_in, fan_out, dtype=jnp.bfloat16):
    # Matches torch.nn.init.xavier_uniform_ on a (fan_out, fan_in) weight;
    # we return the transposed (fan_in, fan_out) layout for y = x @ W.
    bound = math.sqrt(6.0 / (fan_in + fan_out))
    w = jax.random.uniform(
        key, (fan_in, fan_out), minval=-bound, maxval=bound, dtype=jnp.float32)
    return w.astype(dtype)


def init_params(key, bias_const=0.1):
    k1, k2, k3 = jax.random.split(key, 3)
    w1 = xavier_uniform(k1, IN_DIM, HIDDEN)
    b1 = jnp.full((1, HIDDEN), bias_const, jnp.float32)
    w2 = xavier_uniform(k2, HIDDEN, HIDDEN)
    b2 = jnp.full((1, HIDDEN), bias_const, jnp.float32)
    w3 = xavier_uniform(k3, HIDDEN, OUT_DIM)
    b3 = jnp.full((1, OUT_DIM), bias_const, jnp.float32)
    return (w1, b1, w2, b2, w3, b3)


def reference_forward(x, params):
    # Pure-JAX reference mirroring the kernel's numerics (bf16 MXU inputs,
    # f32 accumulation / bias / ReLU). Output kept in f32; kernel output is
    # bf16, so compare with bf16-level tolerances.
    w1, b1, w2, b2, w3, b3 = params
    x = x.astype(w1.dtype)
    h = jnp.maximum(jnp.dot(x, w1, preferred_element_type=jnp.float32) + b1, 0.0)
    h = jnp.maximum(
        jnp.dot(h.astype(w2.dtype), w2, preferred_element_type=jnp.float32) + b2, 0.0)
    return jnp.dot(h.astype(w3.dtype), w3, preferred_element_type=jnp.float32) + b3


if __name__ == "__main__":
    key = jax.random.PRNGKey(0)
    kx, kx2, kp = jax.random.split(key, 3)

    params = init_params(kp)

    # Small demo batch: concat of obs (22) and action (4) features -> (8, 26).
    batch = 8
    x = jax.random.normal(kx, (batch, IN_DIM), dtype=jnp.float32)
    out = jax.block_until_ready(state_nn_forward(x, params))
    ref = reference_forward(x, params)
    assert out.shape == (batch, OUT_DIM)
    assert out.dtype == jnp.bfloat16
    assert jnp.allclose(out.astype(jnp.float32), ref, atol=2e-2, rtol=2e-2), \
        "mismatch vs reference"

    # Non-multiple batch exercises the multi-tile grid + padding path
    # (>=2 parallel grid steps -> both TensorCores on v7x).
    batch2 = 1000
    x2 = jax.random.normal(kx2, (batch2, IN_DIM), dtype=jnp.float32)
    out2 = jax.block_until_ready(state_nn_forward(x2, params, tile_b=512))
    ref2 = reference_forward(x2, params)
    assert out2.shape == (batch2, OUT_DIM)
    assert jnp.allclose(out2.astype(jnp.float32), ref2, atol=2e-2, rtol=2e-2), \
        "mismatch vs reference (tiled)"

    print("KERNEL_OK")
</pallas_src>

<mosaic_0001>
module attributes {stable_mosaic.version = 11 : i64} {
  func.func @_mlp_kernel(%arg0: i32, %arg1: memref<16x32xbf16, #tpu.memory_space<vmem>>, %arg2: memref<32x256xbf16, #tpu.memory_space<vmem>>, %arg3: memref<1x256xf32, #tpu.memory_space<vmem>>, %arg4: memref<256x256xbf16, #tpu.memory_space<vmem>>, %arg5: memref<1x256xf32, #tpu.memory_space<vmem>>, %arg6: memref<256x22xbf16, #tpu.memory_space<vmem>>, %arg7: memref<1x22xf32, #tpu.memory_space<vmem>>, %arg8: memref<16x22xbf16, #tpu.memory_space<vmem>>) attributes {dimension_semantics = [#tpu.dimension_semantics<parallel>], iteration_bounds = array<i64: 1>, scalar_prefetch = 0 : i64, scratch_operands = 0 : i64, tpu.core_type = #tpu.core_type<tc>, window_params = [{transform_indices = @transform_0, window_bounds = array<i64: 16, 32>}, {pipeline_mode = #tpu.pipeline_mode<synchronous>, transform_indices = @transform_1, window_bounds = array<i64: 32, 256>}, {pipeline_mode = #tpu.pipeline_mode<synchronous>, transform_indices = @transform_2, window_bounds = array<i64: 1, 256>}, {pipeline_mode = #tpu.pipeline_mode<synchronous>, transform_indices = @transform_3, window_bounds = array<i64: 256, 256>}, {pipeline_mode = #tpu.pipeline_mode<synchronous>, transform_indices = @transform_4, window_bounds = array<i64: 1, 256>}, {pipeline_mode = #tpu.pipeline_mode<synchronous>, transform_indices = @transform_5, window_bounds = array<i64: 256, 22>}, {pipeline_mode = #tpu.pipeline_mode<synchronous>, transform_indices = @transform_6, window_bounds = array<i64: 1, 22>}, {transform_indices = @transform_7, window_bounds = array<i64: 16, 22>}]} {
    %c0 = arith.constant 0 : index
    %c0_0 = arith.constant 0 : index
    %0 = vector.load %arg1[%c0, %c0_0] : memref<16x32xbf16, #tpu.memory_space<vmem>>, vector<16x32xbf16>
    %c0_1 = arith.constant 0 : index
    %c0_2 = arith.constant 0 : index
    %1 = vector.load %arg2[%c0_1, %c0_2] : memref<32x256xbf16, #tpu.memory_space<vmem>>, vector<32x256xbf16>
    %cst = arith.constant dense<0.000000e+00> : vector<16x256xf32>
    %2 = tpu.matmul %0, %1, %cst {dimension_numbers = #tpu.dot_dimension_numbers<[1], [0], [0], [1], [0, 0, 1, 1], [], []>} : vector<16x32xbf16>, vector<32x256xbf16>, vector<16x256xf32> -> vector<16x256xf32>
    %c0_3 = arith.constant 0 : index
    %c0_4 = arith.constant 0 : index
    %3 = vector.load %arg3[%c0_3, %c0_4] : memref<1x256xf32, #tpu.memory_space<vmem>>, vector<1x256xf32>
    %4 = vector.broadcast %3 : vector<1x256xf32> to vector<16x256xf32>
    %5 = arith.addf %2, %4 : vector<16x256xf32>
    %cst_5 = arith.constant 0.000000e+00 : f32
    %6 = vector.broadcast %cst_5 : f32 to vector<16x256xf32>
    %7 = arith.maximumf %5, %6 : vector<16x256xf32>
    %8 = arith.truncf %7 : vector<16x256xf32> to vector<16x256xbf16>
    %c0_6 = arith.constant 0 : index
    %c0_7 = arith.constant 0 : index
    %9 = vector.load %arg4[%c0_6, %c0_7] : memref<256x256xbf16, #tpu.memory_space<vmem>>, vector<256x256xbf16>
    %cst_8 = arith.constant dense<0.000000e+00> : vector<16x256xf32>
    %10 = tpu.matmul %8, %9, %cst_8 {dimension_numbers = #tpu.dot_dimension_numbers<[1], [0], [0], [1], [0, 0, 1, 1], [], []>} : vector<16x256xbf16>, vector<256x256xbf16>, vector<16x256xf32> -> vector<16x256xf32>
    %c0_9 = arith.constant 0 : index
    %c0_10 = arith.constant 0 : index
    %11 = vector.load %arg5[%c0_9, %c0_10] : memref<1x256xf32, #tpu.memory_space<vmem>>, vector<1x256xf32>
    %12 = vector.broadcast %11 : vector<1x256xf32> to vector<16x256xf32>
    %13 = arith.addf %10, %12 : vector<16x256xf32>
    %cst_11 = arith.constant 0.000000e+00 : f32
    %14 = vector.broadcast %cst_11 : f32 to vector<16x256xf32>
    %15 = arith.maximumf %13, %14 : vector<16x256xf32>
    %16 = arith.truncf %15 : vector<16x256xf32> to vector<16x256xbf16>
    %c0_12 = arith.constant 0 : index
    %c0_13 = arith.constant 0 : index
    %17 = vector.load %arg6[%c0_12, %c0_13] : memref<256x22xbf16, #tpu.memory_space<vmem>>, vector<256x22xbf16>
    %cst_14 = arith.constant dense<0.000000e+00> : vector<16x22xf32>
    %18 = tpu.matmul %16, %17, %cst_14 {dimension_numbers = #tpu.dot_dimension_numbers<[1], [0], [0], [1], [0, 0, 1, 1], [], []>} : vector<16x256xbf16>, vector<256x22xbf16>, vector<16x22xf32> -> vector<16x22xf32>
    %c0_15 = arith.constant 0 : index
    %c0_16 = arith.constant 0 : index
    %19 = vector.load %arg7[%c0_15, %c0_16] : memref<1x22xf32, #tpu.memory_space<vmem>>, vector<1x22xf32>
    %20 = vector.broadcast %19 : vector<1x22xf32> to vector<16x22xf32>
    %21 = arith.addf %18, %20 : vector<16x22xf32>
    %22 = arith.truncf %21 : vector<16x22xf32> to vector<16x22xbf16>
    %c0_17 = arith.constant 0 : index
    %c0_18 = arith.constant 0 : index
    %23 = vector.load %arg8[%c0_17, %c0_18] : memref<16x22xbf16, #tpu.memory_space<vmem>>, vector<16x22xbf16>
    tpu.vector_store %arg8[%c0_17, %c0_18], %22 {strides = array<i32>} : memref<16x22xbf16, #tpu.memory_space<vmem>>, vector<16x22xbf16>,
    return
  }
  func.func @transform_0(%arg0: i32) -> (i32, i32) {
    %c0_i32 = arith.constant 0 : i32
    %c0_i32_0 = arith.constant 0 : i32
    return %arg0, %c0_i32 : i32, i32
  }
  func.func @transform_1(%arg0: i32) -> (i32, i32) {
    %c0_i32 = arith.constant 0 : i32
    %c0_i32_0 = arith.constant 0 : i32
    %c0_i32_1 = arith.constant 0 : i32
    return %c0_i32, %c0_i32_0 : i32, i32
  }
  func.func @transform_2(%arg0: i32) -> (i32, i32) {
    %c0_i32 = arith.constant 0 : i32
    %c0_i32_0 = arith.constant 0 : i32
    %c0_i32_1 = arith.constant 0 : i32
    return %c0_i32, %c0_i32_0 : i32, i32
  }
  func.func @transform_3(%arg0: i32) -> (i32, i32) {
    %c0_i32 = arith.constant 0 : i32
    %c0_i32_0 = arith.constant 0 : i32
    %c0_i32_1 = arith.constant 0 : i32
    return %c0_i32, %c0_i32_0 : i32, i32
  }
  func.func @transform_4(%arg0: i32) -> (i32, i32) {
    %c0_i32 = arith.constant 0 : i32
    %c0_i32_0 = arith.constant 0 : i32
    %c0_i32_1 = arith.constant 0 : i32
    return %c0_i32, %c0_i32_0 : i32, i32
  }
  func.func @transform_5(%arg0: i32) -> (i32, i32) {
    %c0_i32 = arith.constant 0 : i32
    %c0_i32_0 = arith.constant 0 : i32
    %c0_i32_1 = arith.constant 0 : i32
    return %c0_i32, %c0_i32_0 : i32, i32
  }
  func.func @transform_6(%arg0: i32) -> (i32, i32) {
    %c0_i32 = arith.constant 0 : i32
    %c0_i32_0 = arith.constant 0 : i32
    %c0_i32_1 = arith.constant 0 : i32
    return %c0_i32, %c0_i32_0 : i32, i32
  }
  func.func @transform_7(%arg0: i32) -> (i32, i32) {
    %c0_i32 = arith.constant 0 : i32
    %c0_i32_0 = arith.constant 0 : i32
    return %arg0, %c0_i32 : i32, i32
  }
}

</mosaic_0001>

<llo_original>
// kernel: tpu_custom_call.1
$region0: #{tpu_custom_call.1}
  #allocation0 [shape = 'u32[]', space=smem, size = 0x4, offset = 0x4, fixed_abs, tag = 'smem constant byte address 0x4 - core index']
  #allocation1 [shape = 'u32[144,128]{1,0:T(1,128)}', space=vmem, size = 0x12000, scoped, tag = 'internal scratch']
  %s0 = inlined_call_operand.vmem [shape: bf16[16,32], index: 0, kind: input, shape index: {}]
  %s1 = inlined_call_operand.vmem [shape: bf16[32,256], index: 1, kind: input, shape index: {}]
  %s2 = inlined_call_operand.vmem [shape: f32[1,256], index: 2, kind: input, shape index: {}]
  %s3 = inlined_call_operand.hbm [shape: bf16[256,256], index: 3, kind: input, shape index: {}]
  %s4 = inlined_call_operand.vmem [shape: f32[1,256], index: 4, kind: input, shape index: {}]
  %s5 = inlined_call_operand.vmem [shape: bf16[256,22], index: 5, kind: input, shape index: {}]
  %s6 = inlined_call_operand.vmem [shape: f32[1,22], index: 6, kind: input, shape index: {}]
  %s7 = inlined_call_operand.hbm [shape: bf16[16,22], index: 7, kind: output, shape index: {}]
  %s8 = sld [smem:[#allocation0]]
  $region42: #{tpu_custom_call.1} parent=0
    _
  %s10 = ssub.s32 1, %s8
  %s11 = scalar_select 0, %s10, %s8
  $region1: #{tpu_custom_call.1} parent=0
    #allocation2 [shape = 'u8[131072]{0}', space=vmem, size = 0x20000, scoped, tag = 'input window, operand 3, single buffered']
    #allocation3 [shape = 's32[1]{0}', space=sflag, size = 0x4, scoped, tag = 'scoped memory for tpu_custom_call.1']
    #allocation4 [shape = 's32[1]{0}', space=sflag, size = 0x4, scoped, tag = 'scoped memory for tpu_custom_call.1']
    #allocation5 [shape = 'u8[4096]{0}', space=vmem, size = 0x1000, scoped, tag = 'output window, operand 0, single buffered']
    %12 = vsyncpa [#allocation3], 0
    %13 = vsyncpa [#allocation4], 0
    // Predicated region
    $region2: #{tpu_custom_call.1} parent=1 // pred_check
      _
    $region3: #{tpu_custom_call.1} parent=1 // pred_check_branch
      %15 = sbr.rel (0) target = $region5
    $region4: #{tpu_custom_call.1} parent=1 // pred_region
      _
    $region5: #{tpu_custom_call.1} parent=1 // pred_fallthru
      _
    // Predicated region
    $region6: #{tpu_custom_call.1} parent=1 // pred_check
      _
    $region7: #{tpu_custom_call.1} parent=1 // pred_check_branch
      %17 = sbr.rel (0) target = $region9
    $region8: #{tpu_custom_call.1} parent=1 // pred_region
      _
    $region9: #{tpu_custom_call.1} parent=1 // pred_fallthru
      _
    // Predicated region
    $region10: #{tpu_custom_call.1} parent=1 // pred_check
      _
    $region11: #{tpu_custom_call.1} parent=1 // pred_check_branch
      %19 = sbr.rel (0) target = $region13
    $region12: #{tpu_custom_call.1} parent=1 // pred_region
      _
    $region13: #{tpu_custom_call.1} parent=1 // pred_fallthru
      _
    // Predicated region
    $region14: #{tpu_custom_call.1} parent=1 // pred_check
      _
    $region15: #{tpu_custom_call.1} parent=1 // pred_check_branch
      %21 = sbr.rel (0) target = $region17
    $region16: #{tpu_custom_call.1} parent=1 // pred_region
      %s23 = ssub.s32 4096, 4096
      %24 = vsyncadd [#allocation3], %s23
      %s25 = sshll.u32 [#allocation2], 4
      %s26 = int_to_ptr.vmem [resolvable:$true] %s25
      %31 = dma.hbm_to_vmem [thread:$0]  %s3, 4096, %s26, [#allocation3], 128, 128, 8
    $region17: #{tpu_custom_call.1} parent=1 // pred_fallthru
      _
    // Predicated region
    $region18: #{tpu_custom_call.1} parent=1 // pred_check
      _
    $region19: #{tpu_custom_call.1} parent=1 // pred_check_branch
      %33 = sbr.rel (0) target = $region21
    $region20: #{tpu_custom_call.1} parent=1 // pred_region
      _
    $region21: #{tpu_custom_call.1} parent=1 // pred_fallthru
      _
    // Predicated region
    $region22: #{tpu_custom_call.1} parent=1 // pred_check
      _
    $region23: #{tpu_custom_call.1} parent=1 // pred_check_branch
      %35 = sbr.rel (0) target = $region25
    $region24: #{tpu_custom_call.1} parent=1 // pred_region
      _
    $region25: #{tpu_custom_call.1} parent=1 // pred_fallthru
      _
    // Predicated region
    $region26: #{tpu_custom_call.1} parent=1 // pred_check
      _
    $region27: #{tpu_custom_call.1} parent=1 // pred_check_branch
      %37 = sbr.rel (0) target = $region29
    $region28: #{tpu_custom_call.1} parent=1 // pred_region
      _
    $region29: #{tpu_custom_call.1} parent=1 // pred_fallthru
      _
    // Predicated region
    $region30: #{tpu_custom_call.1} parent=1 // pred_check
      _
    $region31: #{tpu_custom_call.1} parent=1 // pred_check_branch
      %39 = sbr.rel (0) target = $region33
    $region32: #{tpu_custom_call.1} parent=1 // pred_region
      %40 = dma.done [#allocation3], 4096
    $region33: #{tpu_custom_call.1} parent=1 // pred_fallthru
      _
    %v42 = vld [vmem:[%s0] sm:$0xf]
    %v43 = vld [vmem:[%s0 + $0x4] sm:$0xf]
    %v44 = vld [vmem:[%s1] sm:$0xff]
    %v45 = vld [vmem:[%s1 + $0x8] sm:$0xff]
    %v46 = vld [vmem:[%s1 + $0x10] sm:$0xff]
    %v47 = vld [vmem:[%s1 + $0x18] sm:$0xff]
    %v48 = vld [vmem:[%s2] sm:$0x3]
    %v50 = vlaneseq
    %v51 = vshrl.u32 %v50, 7
    %v52 = vsub.s32 0, %v51
    %v53 = vrot.slane %v48, %v52
    %v54 = vlaneseq
    %v55 = vshrl.u32 %v54, 7
    %v56 = vsub.s32 1, %v55
    %v57 = vrot.slane %v48, %v56
    %v62 = vunpack.c.l.b16 %v42
    %v63 = vunpack.c.l.b16 %v43
    %v64 = vpack.c.b16 %v63, %v62
    %v69 = vunpack.c.l.b16 %v44
    %v70 = vunpack.c.h.b16 %v44
    %v71 = vunpack.c.l.b16 %v45
    %v72 = vunpack.c.h.b16 %v45
    %v73 = vunpack.c.l.b16 %v46
    %v74 = vunpack.c.h.b16 %v46
    %v75 = vunpack.c.l.b16 %v47
    %v76 = vunpack.c.h.b16 %v47
    %v77 = vpack.c.b16 %v71, %v69
    %v78 = vpack.c.b16 %v72, %v70
    %v79 = vpack.c.b16 %v75, %v73
    %v80 = vpack.c.b16 %v76, %v74
    %vm85 = vcmask 261120
    %v87 = vsel %vm85, %v64, 0
    %89 = vmatprep.subr.bf16.mxu0 0
    %90 = vmatpush1.bf16.msra.mxu0 0
    %91 = vmatprep.subr.bf16.mxu0 0
    %92 = vmatpush1.bf16.msra.mxu0 0
    %93 = vmatprep.subr.bf16.mxu0 0
    %94 = vmatpush1.bf16.msra.mxu0 0
    %95 = vmatprep.subr.bf16.mxu0 0
    %96 = vmatpush1.bf16.msra.mxu0 0
    %97 = vmatprep.subr.bf16.mxu0 0
    %98 = vmatpush1.bf16.msra.mxu0 0
    %99 = vmatprep.subr.bf16.mxu0 0
    %100 = vmatpush1.bf16.msra.mxu0 0
    %101 = vmatprep.subr.bf16.mxu0 %v80
    %102 = vmatpush1.bf16.msra.mxu0 %v79
    %103 = vmatprep.subr.bf16.mxu0 %v78
    %104 = vmatpush1.bf16.msra.mxu0 %v77
    %105 = vmatprep.subr.bf16.mxu0 0
    %106 = vmatpush2.bf16.msra.mxu0 0
    %107 = vmatprep.subr.bf16.mxu0 0
    %108 = vmatpush2.bf16.msra.mxu0 0
    %109 = vmatprep.subr.bf16.mxu0 0
    %110 = vmatpush2.bf16.msra.mxu0 0
    %111 = vmatprep.subr.bf16.mxu0 0
    %112 = vmatpush2.bf16.msra.mxu0 0
    %113 = vmatprep.subr.bf16.mxu0 0
    %114 = vmatpush2.bf16.msra.mxu0 0
    %115 = vmatprep.subr.bf16.mxu0 0
    %116 = vmatpush2.bf16.msra.mxu0 0
    %117 = vmatprep.subr.bf16.mxu0 0
    %118 = vmatpush2.bf16.msra.mxu0 0
    %119 = vmatprep.subr.bf16.mxu0 0
    %120 = vmatpush2.bf16.msra.mxu0 0
    %121 = vmatprep.mubr.bf16.mxu0 0
    %122 = vmatmul.mubr.bf16.gmra.mxu0 %v87
    %v123 = vpop.f32.mrf.mxu0
    %v124 = vadd.f32 %v53, %v123
    %v125 = vpop.f32.mrf.mxu0
    %v126 = vadd.f32 %v57, %v125
    %v127 = vpop.f32.mrf.mxu0
    %v128 = vadd.f32 %v53, %v127
    %v129 = vpop.f32.mrf.mxu0
    %v130 = vadd.f32 %v57, %v129
    %131 = vdwg.mxu0
    %v132 = vmax.f32 %v124, 0.0
    %v133 = vmax.f32 %v126, 0.0
    %v134 = vmax.f32 %v128, 0.0
    %v135 = vmax.f32 %v130, 0.0
    %v136 = vpack.c.bf16 %v134, %v132
    %v137 = vpack.c.bf16 %v135, %v133
    %v138 = vld [vmem:[#allocation2] sm:$0xff]
    %v139 = vld [vmem:[#allocation2 + $0x8] sm:$0xff]
    %v140 = vld [vmem:[#allocation2 + $0x10] sm:$0xff]
    %v141 = vld [vmem:[#allocation2 + $0x18] sm:$0xff]
    %v142 = vld [vmem:[#allocation2 + $0x20] sm:$0xff]
    %v143 = vld [vmem:[#allocation2 + $0x28] sm:$0xff]
    %v144 = vld [vmem:[#allocation2 + $0x30] sm:$0xff]
    %v145 = vld [vmem:[#allocation2 + $0x38] sm:$0xff]
    %v146 = vld [vmem:[#allocation2 + $0x40] sm:$0xff]
    %v147 = vld [vmem:[#allocation2 + $0x48] sm:$0xff]
    %v148 = vld [vmem:[#allocation2 + $0x50] sm:$0xff]
    %v149 = vld [vmem:[#allocation2 + $0x58] sm:$0xff]
    %v150 = vld [vmem:[#allocation2 + $0x60] sm:$0xff]
    %v151 = vld [vmem:[#allocation2 + $0x68] sm:$0xff]
    %v152 = vld [vmem:[#allocation2 + $0x70] sm:$0xff]
    %v153 = vld [vmem:[#allocation2 + $0x78] sm:$0xff]
    %v154 = vld [vmem:[#allocation2 + $0x80] sm:$0xff]
    %v155 = vld [vmem:[#allocation2 + $0x88] sm:$0xff]
    %v156 = vld [vmem:[#allocation2 + $0x90] sm:$0xff]
    %v157 = vld [vmem:[#allocation2 + $0x98] sm:$0xff]
    %v158 = vld [vmem:[#allocation2 + $0xa0] sm:$0xff]
    %v159 = vld [vmem:[#allocation2 + $0xa8] sm:$0xff]
    %v160 = vld [vmem:[#allocation2 + $0xb0] sm:$0xff]
    %v161 = vld [vmem:[#allocation2 + $0xb8] sm:$0xff]
    %v162 = vld [vmem:[#allocation2 + $0xc0] sm:$0xff]
    %v163 = vld [vmem:[#allocation2 + $0xc8] sm:$0xff]
    %v164 = vld [vmem:[#allocation2 + $0xd0] sm:$0xff]
    %v165 = vld [vmem:[#allocation2 + $0xd8] sm:$0xff]
    %v166 = vld [vmem:[#allocation2 + $0xe0] sm:$0xff]
    %v167 = vld [vmem:[#allocation2 + $0xe8] sm:$0xff]
    %v168 = vld [vmem:[#allocation2 + $0xf0] sm:$0xff]
    %v169 = vld [vmem:[#allocation2 + $0xf8] sm:$0xff]
    %v170 = vld [vmem:[%s4] sm:$0x3]
    %v172 = vlaneseq
    %v173 = vshrl.u32 %v172, 7
    %v174 = vsub.s32 0, %v173
    %v175 = vrot.slane %v170, %v174
    %v176 = vlaneseq
    %v177 = vshrl.u32 %v176, 7
    %v178 = vsub.s32 1, %v177
    %v179 = vrot.slane %v170, %v178
    %v214 = vunpack.c.l.b16 %v138
    %v215 = vunpack.c.h.b16 %v138
    %v216 = vunpack.c.l.b16 %v139
    %v217 = vunpack.c.h.b16 %v139
    %v218 = vunpack.c.l.b16 %v140
    %v219 = vunpack.c.h.b16 %v140
    %v220 = vunpack.c.l.b16 %v141
    %v221 = vunpack.c.h.b16 %v141
    %v222 = vunpack.c.l.b16 %v142
    %v223 = vunpack.c.h.b16 %v142
    %v224 = vunpack.c.l.b16 %v143
    %v225 = vunpack.c.h.b16 %v143
    %v226 = vunpack.c.l.b16 %v144
    %v227 = vunpack.c.h.b16 %v144
    %v228 = vunpack.c.l.b16 %v145
    %v229 = vunpack.c.h.b16 %v145
    %v230 = vunpack.c.l.b16 %v146
    %v231 = vunpack.c.h.b16 %v146
    %v232 = vunpack.c.l.b16 %v147
    %v233 = vunpack.c.h.b16 %v147
    %v234 = vunpack.c.l.b16 %v148
    %v235 = vunpack.c.h.b16 %v148
    %v236 = vunpack.c.l.b16 %v149
    %v237 = vunpack.c.h.b16 %v149
    %v238 = vunpack.c.l.b16 %v150
    %v239 = vunpack.c.h.b16 %v150
    %v240 = vunpack.c.l.b16 %v151
    %v241 = vunpack.c.h.b16 %v151
    %v242 = vunpack.c.l.b16 %v152
    %v243 = vunpack.c.h.b16 %v152
    %v244 = vunpack.c.l.b16 %v153
    %v245 = vunpack.c.h.b16 %v153
    %v246 = vunpack.c.l.b16 %v154
    %v247 = vunpack.c.h.b16 %v154
    %v248 = vunpack.c.l.b16 %v155
    %v249 = vunpack.c.h.b16 %v155
    %v250 = vunpack.c.l.b16 %v156
    %v251 = vunpack.c.h.b16 %v156
    %v252 = vunpack.c.l.b16 %v157
    %v253 = vunpack.c.h.b16 %v157
    %v254 = vunpack.c.l.b16 %v158
    %v255 = vunpack.c.h.b16 %v158
    %v256 = vunpack.c.l.b16 %v159
    %v257 = vunpack.c.h.b16 %v159
    %v258 = vunpack.c.l.b16 %v160
    %v259 = vunpack.c.h.b16 %v160
    %v260 = vunpack.c.l.b16 %v161
    %v261 = vunpack.c.h.b16 %v161
    %v262 = vunpack.c.l.b16 %v162
    %v263 = vunpack.c.h.b16 %v162
    %v264 = vunpack.c.l.b16 %v163
    %v265 = vunpack.c.h.b16 %v163
    %v266 = vunpack.c.l.b16 %v164
    %v267 = vunpack.c.h.b16 %v164
    %v268 = vunpack.c.l.b16 %v165
    %v269 = vunpack.c.h.b16 %v165
    %v270 = vunpack.c.l.b16 %v166
    %v271 = vunpack.c.h.b16 %v166
    %v272 = vunpack.c.l.b16 %v167
    %v273 = vunpack.c.h.b16 %v167
    %v274 = vunpack.c.l.b16 %v168
    %v275 = vunpack.c.h.b16 %v168
    %v276 = vunpack.c.l.b16 %v169
    %v277 = vunpack.c.h.b16 %v169
    %v278 = vpack.c.b16 %v216, %v214
    %v279 = vpack.c.b16 %v217, %v215
    %v280 = vpack.c.b16 %v220, %v218
    %v281 = vpack.c.b16 %v221, %v219
    %v282 = vpack.c.b16 %v224, %v222
    %v283 = vpack.c.b16 %v225, %v223
    %v284 = vpack.c.b16 %v228, %v226
    %v285 = vpack.c.b16 %v229, %v227
    %v286 = vpack.c.b16 %v232, %v230
    %v287 = vpack.c.b16 %v233, %v231
    %v288 = vpack.c.b16 %v236, %v234
    %v289 = vpack.c.b16 %v237, %v235
    %v290 = vpack.c.b16 %v240, %v238
    %v291 = vpack.c.b16 %v241, %v239
    %v292 = vpack.c.b16 %v244, %v242
    %v293 = vpack.c.b16 %v245, %v243
    %v294 = vpack.c.b16 %v248, %v246
    %v295 = vpack.c.b16 %v249, %v247
    %v296 = vpack.c.b16 %v252, %v250
    %v297 = vpack.c.b16 %v253, %v251
    %v298 = vpack.c.b16 %v256, %v254
    %v299 = vpack.c.b16 %v257, %v255
    %v300 = vpack.c.b16 %v260, %v258
    %v301 = vpack.c.b16 %v261, %v259
    %v302 = vpack.c.b16 %v264, %v262
    %v303 = vpack.c.b16 %v265, %v263
    %v304 = vpack.c.b16 %v268, %v266
    %v305 = vpack.c.b16 %v269, %v267
    %v306 = vpack.c.b16 %v272, %v270
    %v307 = vpack.c.b16 %v273, %v271
    %v308 = vpack.c.b16 %v276, %v274
    %v309 = vpack.c.b16 %v277, %v275
    %342 = vmatprep.subr.bf16.mxu0 %v293
    %343 = vmatpush1.bf16.msra.mxu0 %v292
    %344 = vmatprep.subr.bf16.mxu0 %v291
    %345 = vmatpush1.bf16.msra.mxu0 %v290
    %346 = vmatprep.subr.bf16.mxu0 %v289
    %347 = vmatpush1.bf16.msra.mxu0 %v288
    %348 = vmatprep.subr.bf16.mxu0 %v287
    %349 = vmatpush1.bf16.msra.mxu0 %v286
    %350 = vmatprep.subr.bf16.mxu0 %v285
    %351 = vmatpush1.bf16.msra.mxu0 %v284
    %352 = vmatprep.subr.bf16.mxu0 %v283
    %353 = vmatpush1.bf16.msra.mxu0 %v282
    %354 = vmatprep.subr.bf16.mxu0 %v281
    %355 = vmatpush1.bf16.msra.mxu0 %v280
    %356 = vmatprep.subr.bf16.mxu0 %v279
    %357 = vmatpush1.bf16.msra.mxu0 %v278
    %358 = vmatprep.subr.bf16.mxu0 %v309
    %359 = vmatpush2.bf16.msra.mxu0 %v308
    %360 = vmatprep.subr.bf16.mxu0 %v307
    %361 = vmatpush2.bf16.msra.mxu0 %v306
    %362 = vmatprep.subr.bf16.mxu0 %v305
    %363 = vmatpush2.bf16.msra.mxu0 %v304
    %364 = vmatprep.subr.bf16.mxu0 %v303
    %365 = vmatpush2.bf16.msra.mxu0 %v302
    %366 = vmatprep.subr.bf16.mxu0 %v301
    %367 = vmatpush2.bf16.msra.mxu0 %v300
    %368 = vmatprep.subr.bf16.mxu0 %v299
    %369 = vmatpush2.bf16.msra.mxu0 %v298
    %370 = vmatprep.subr.bf16.mxu0 %v297
    %371 = vmatpush2.bf16.msra.mxu0 %v296
    %372 = vmatprep.subr.bf16.mxu0 %v295
    %373 = vmatpush2.bf16.msra.mxu0 %v294
    %374 = vmatprep.mubr.bf16.mxu0 %v137
    %375 = vmatmul.mubr.bf16.gmra.mxu0 %v136
    %v376 = vpop.f32.mrf.mxu0
    %v377 = vadd.f32 %v175, %v376
    %v378 = vpop.f32.mrf.mxu0
    %v379 = vadd.f32 %v179, %v378
    %v380 = vpop.f32.mrf.mxu0
    %v381 = vadd.f32 %v175, %v380
    %v382 = vpop.f32.mrf.mxu0
    %v383 = vadd.f32 %v179, %v382
    %384 = vdwg.mxu0
    %v385 = vmax.f32 %v377, 0.0
    %v386 = vmax.f32 %v379, 0.0
    %v387 = vmax.f32 %v381, 0.0
    %v388 = vmax.f32 %v383, 0.0
    %v389 = vpack.c.bf16 %v387, %v385
    %v390 = vpack.c.bf16 %v388, %v386
    %v391 = vld [vmem:[%s5] sm:$0xf]
    %v392 = vld [vmem:[%s5 + $0x4] sm:$0xf]
    %v393 = vld [vmem:[%s5 + $0x8] sm:$0xf]
    %v394 = vld [vmem:[%s5 + $0xc] sm:$0xf]
    %v395 = vld [vmem:[%s5 + $0x10] sm:$0xf]
    %v396 = vld [vmem:[%s5 + $0x14] sm:$0xf]
    %v397 = vld [vmem:[%s5 + $0x18] sm:$0xf]
    %v398 = vld [vmem:[%s5 + $0x1c] sm:$0xf]
    %v399 = vld [vmem:[%s5 + $0x20] sm:$0xf]
    %v400 = vld [vmem:[%s5 + $0x24] sm:$0xf]
    %v401 = vld [vmem:[%s5 + $0x28] sm:$0xf]
    %v402 = vld [vmem:[%s5 + $0x2c] sm:$0xf]
    %v403 = vld [vmem:[%s5 + $0x30] sm:$0xf]
    %v404 = vld [vmem:[%s5 + $0x34] sm:$0xf]
    %v405 = vld [vmem:[%s5 + $0x38] sm:$0xf]
    %v406 = vld [vmem:[%s5 + $0x3c] sm:$0xf]
    %v407 = vld [vmem:[%s5 + $0x40] sm:$0xf]
    %v408 = vld [vmem:[%s5 + $0x44] sm:$0xf]
    %v409 = vld [vmem:[%s5 + $0x48] sm:$0xf]
    %v410 = vld [vmem:[%s5 + $0x4c] sm:$0xf]
    %v411 = vld [vmem:[%s5 + $0x50] sm:$0xf]
    %v412 = vld [vmem:[%s5 + $0x54] sm:$0xf]
    %v413 = vld [vmem:[%s5 + $0x58] sm:$0xf]
    %v414 = vld [vmem:[%s5 + $0x5c] sm:$0xf]
    %v415 = vld [vmem:[%s5 + $0x60] sm:$0xf]
    %v416 = vld [vmem:[%s5 + $0x64] sm:$0xf]
    %v417 = vld [vmem:[%s5 + $0x68] sm:$0xf]
    %v418 = vld [vmem:[%s5 + $0x6c] sm:$0xf]
    %v419 = vld [vmem:[%s5 + $0x70] sm:$0xf]
    %v420 = vld [vmem:[%s5 + $0x74] sm:$0xf]
    %v421 = vld [vmem:[%s5 + $0x78] sm:$0xf]
    %v422 = vld [vmem:[%s5 + $0x7c] sm:$0xf]
    %v423 = vld [vmem:[%s6] sm:$0x1]
    %v425 = vlaneseq
    %v426 = vshrl.u32 %v425, 7
    %v427 = vsub.s32 0, %v426
    %v428 = vrot.slane %v423, %v427
    %v462 = vunpack.c.l.b16 %v391
    %v463 = vunpack.c.l.b16 %v392
    %v464 = vunpack.c.l.b16 %v393
    %v465 = vunpack.c.l.b16 %v394
    %v466 = vunpack.c.l.b16 %v395
    %v467 = vunpack.c.l.b16 %v396
    %v468 = vunpack.c.l.b16 %v397
    %v469 = vunpack.c.l.b16 %v398
    %v470 = vunpack.c.l.b16 %v399
    %v471 = vunpack.c.l.b16 %v400
    %v472 = vunpack.c.l.b16 %v401
    %v473 = vunpack.c.l.b16 %v402
    %v474 = vunpack.c.l.b16 %v403
    %v475 = vunpack.c.l.b16 %v404
    %v476 = vunpack.c.l.b16 %v405
    %v477 = vunpack.c.l.b16 %v406
    %v478 = vunpack.c.l.b16 %v407
    %v479 = vunpack.c.l.b16 %v408
    %v480 = vunpack.c.l.b16 %v409
    %v481 = vunpack.c.l.b16 %v410
    %v482 = vunpack.c.l.b16 %v411
    %v483 = vunpack.c.l.b16 %v412
    %v484 = vunpack.c.l.b16 %v413
    %v485 = vunpack.c.l.b16 %v414
    %v486 = vunpack.c.l.b16 %v415
    %v487 = vunpack.c.l.b16 %v416
    %v488 = vunpack.c.l.b16 %v417
    %v489 = vunpack.c.l.b16 %v418
    %v490 = vunpack.c.l.b16 %v419
    %v491 = vunpack.c.l.b16 %v420
    %v492 = vunpack.c.l.b16 %v421
    %v493 = vunpack.c.l.b16 %v422
    %v494 = vpack.c.b16 %v463, %v462
    %v495 = vpack.c.b16 %v465, %v464
    %v496 = vpack.c.b16 %v467, %v466
    %v497 = vpack.c.b16 %v469, %v468
    %v498 = vpack.c.b16 %v471, %v470
    %v499 = vpack.c.b16 %v473, %v472
    %v500 = vpack.c.b16 %v475, %v474
    %v501 = vpack.c.b16 %v477, %v476
    %v502 = vpack.c.b16 %v479, %v478
    %v503 = vpack.c.b16 %v481, %v480
    %v504 = vpack.c.b16 %v483, %v482
    %v505 = vpack.c.b16 %v485, %v484
    %v506 = vpack.c.b16 %v487, %v486
    %v507 = vpack.c.b16 %v489, %v488
    %v508 = vpack.c.b16 %v491, %v490
    %v509 = vpack.c.b16 %v493, %v492
    %526 = vmatprep.subr.bf16.mxu0 0
    %527 = vmatpush1.bf16.msra.mxu0 %v501
    %528 = vmatprep.subr.bf16.mxu0 0
    %529 = vmatpush1.bf16.msra.mxu0 %v500
    %530 = vmatprep.subr.bf16.mxu0 0
    %531 = vmatpush1.bf16.msra.mxu0 %v499
    %532 = vmatprep.subr.bf16.mxu0 0
    %533 = vmatpush1.bf16.msra.mxu0 %v498
    %534 = vmatprep.subr.bf16.mxu0 0
    %535 = vmatpush1.bf16.msra.mxu0 %v497
    %536 = vmatprep.subr.bf16.mxu0 0
    %537 = vmatpush1.bf16.msra.mxu0 %v496
    %538 = vmatprep.subr.bf16.mxu0 0
    %539 = vmatpush1.bf16.msra.mxu0 %v495
    %540 = vmatprep.subr.bf16.mxu0 0
    %541 = vmatpush1.bf16.msra.mxu0 %v494
    %542 = vmatprep.subr.bf16.mxu0 0
    %543 = vmatpush2.bf16.msra.mxu0 %v509
    %544 = vmatprep.subr.bf16.mxu0 0
    %545 = vmatpush2.bf16.msra.mxu0 %v508
    %546 = vmatprep.subr.bf16.mxu0 0
    %547 = vmatpush2.bf16.msra.mxu0 %v507
    %548 = vmatprep.subr.bf16.mxu0 0
    %549 = vmatpush2.bf16.msra.mxu0 %v506
    %550 = vmatprep.subr.bf16.mxu0 0
    %551 = vmatpush2.bf16.msra.mxu0 %v505
    %552 = vmatprep.subr.bf16.mxu0 0
    %553 = vmatpush2.bf16.msra.mxu0 %v504
    %554 = vmatprep.subr.bf16.mxu0 0
    %555 = vmatpush2.bf16.msra.mxu0 %v503
    %556 = vmatprep.subr.bf16.mxu0 0
    %557 = vmatpush2.bf16.msra.mxu0 %v502
    %558 = vmatprep.mubr.bf16.mxu0 %v390
    %559 = vmatmul.mubr.bf16.gmra.mxu0 %v389
    %v560 = vpop.f32.mrf.mxu0
    %v561 = vadd.f32 %v428, %v560
    %v562 = vpop.f32.mrf.mxu0
    %v563 = vpop.f32.mrf.mxu0
    %v564 = vadd.f32 %v428, %v563
    %v565 = vpop.f32.mrf.mxu0
    %566 = vdwg.mxu0
    %v567 = vpack.c.bf16 %v564, %v561
    %v569 = vunpack.c.l.b16 %v567
    %v570 = vunpack.c.h.b16 %v567
    %v571 = vpack.c.b16 %v569, %v569
    %v572 = vpack.c.b16 %v570, %v570
    %vm575 = vcmask 175104
    %576 = vst.msk [vmem:[#allocation5] sm:$0xf] %vm575, %v571
    %577 = vst.msk [vmem:[#allocation5 + $0x4] sm:$0xf] %vm575, %v572
    // Predicated region
    $region34: #{tpu_custom_call.1} parent=1 // pred_check
      _
    $region35: #{tpu_custom_call.1} parent=1 // pred_check_branch
      %579 = sbr.rel (0) target = $region37
    $region36: #{tpu_custom_call.1} parent=1 // pred_region
      %s581 = ssub.s32 128, 128
      %582 = vsyncadd [#allocation4], %s581
      %s583 = sshll.u32 [#allocation5], 4
      %s584 = int_to_ptr.vmem [resolvable:$true] %s583
      %589 = dma.vmem_to_hbm [thread:$0]  %s584, 128, %s7, [#allocation4], 64, 64, 4
    $region37: #{tpu_custom_call.1} parent=1 // pred_fallthru
      _
    // Predicated region
    $region38: #{tpu_custom_call.1} parent=1 // pred_check
      _
    $region39: #{tpu_custom_call.1} parent=1 // pred_check_branch
      %591 = sbr.rel (0) target = $region41
    $region40: #{tpu_custom_call.1} parent=1 // pred_region
      %592 = dma.done [#allocation4], 128
    $region41: #{tpu_custom_call.1} parent=1 // pred_fallthru
      _
    %593 = vsyncpa [#allocation3], 1
    %594 = vsyncpa [#allocation4], 1

</llo_original>
